<compile_context>
chip_gen: v5e
topology: v5e:2x2
jax: 0.10.0
libtpu: 0.0.40
codegen_flags: <defaults>
</compile_context>

<pallas_src>
import functools

import jax
import jax.numpy as jnp
from jax.experimental import pallas as pl
from jax.experimental.pallas import tpu as pltpu

INPUT_DIM = 256
NUM_CLASSES = 65
LANE = 128                       # class dim padded (once, at init) to this
MAX_TILE_M = 2048                # batch-tile ceiling; ~6.3 MiB VMEM at f32
VMEM_LIMIT_BYTES = 32 * 1024 * 1024


def _round_up(x: int, m: int) -> int:
    return (x + m - 1) // m * m


def _pick_tile_m(batch: int) -> int:
    """Sublane-aligned batch tile; >=2 grid steps whenever B > 8."""
    tm = _round_up(max(-(-batch // 2), 1), 8)
    return max(8, min(tm, MAX_TILE_M))


# --------------------------------------------------------------------------- #
# Kernel
# --------------------------------------------------------------------------- #
def _linear_kernel(x_ref, w_ref, b_ref, o_ref, *, num_valid: int):
    # x_ref: (tm, D)  w_ref: (D, Cp)  b_ref: (1, Cp)  o_ref: (tm, Cp)
    acc = jnp.dot(x_ref[...], w_ref[...], preferred_element_type=jnp.float32)
    acc = acc + b_ref[...].astype(jnp.float32)
    # Mask pad class columns to -inf so padded logits are directly consumable
    # (softmax/argmax-safe) with no wrapper-side slice required.
    col = jax.lax.broadcasted_iota(jnp.int32, acc.shape, dimension=1)
    acc = jnp.where(col < num_valid, acc, -jnp.inf)
    o_ref[...] = acc.astype(o_ref.dtype)


# --------------------------------------------------------------------------- #
# Wrappers
# --------------------------------------------------------------------------- #
def classifier_forward_padded(x, w_p, b_p, *, num_classes: int = NUM_CLASSES):
    """logits_padded = x @ w_p + b_p, shape (B, Cp); pad columns hold -inf.

    x:   (B, D)       activations (f32 or bf16)
    w_p: (D, Cp)      pre-padded weight (Cp = round_up(num_classes, 128))
    b_p: (1, Cp)      pre-padded bias
    """
    B, D = x.shape
    Dw, Cp = w_p.shape
    assert D == Dw, (D, Dw)
    assert Cp % LANE == 0 and Cp >= num_classes
    b_p = b_p.reshape(1, Cp)

    tm = _pick_tile_m(B)
    grid_m = pl.cdiv(B, tm)      # partial last block handled (masked) by Pallas

    itemsize = jnp.dtype(x.dtype).itemsize
    cost = pl.CostEstimate(
        flops=2 * B * D * Cp,
        transcendentals=0,
        bytes_accessed=(B * D + D * Cp + Cp + B * Cp) * itemsize,
    )

    kernel = functools.partial(_linear_kernel, num_valid=num_classes)

    return pl.pallas_call(
        kernel,
        out_shape=jax.ShapeDtypeStruct((B, Cp), x.dtype),
        grid_spec=pl.GridSpec(
            grid=(grid_m,),
            in_specs=[
                pl.BlockSpec((tm, D), lambda i: (i, 0)),    # stream batch tiles
                pl.BlockSpec((D, Cp), lambda i: (0, 0)),    # weight VMEM-resident
                pl.BlockSpec((1, Cp), lambda i: (0, 0)),    # bias  VMEM-resident
            ],
            out_specs=pl.BlockSpec((tm, Cp), lambda i: (i, 0)),
        ),
        compiler_params=pltpu.CompilerParams(
            dimension_semantics=("parallel",),   # megacore-shardable batch axis
            vmem_limit_bytes=VMEM_LIMIT_BYTES,
        ),
        cost_estimate=cost,
    )(x, w_p, b_p)


def classifier_forward(x, w_p, b_p, *, num_classes: int = NUM_CLASSES):
    """Strict PyTorch-shaped output (B, num_classes).

    Prefer `classifier_forward_padded` downstream to avoid this extra slice.
    """
    return classifier_forward_padded(x, w_p, b_p, num_classes=num_classes)[:, :num_classes]


# --------------------------------------------------------------------------- #
# Parameters (padded once, off the hot path)
# --------------------------------------------------------------------------- #
def prepare_params(w, b):
    """Pad (D, C) weight and (C,)/(1, C) bias to lane-dense (D, Cp)/(1, Cp)."""
    D, C = w.shape
    Cp = _round_up(C, LANE)
    b = jnp.asarray(b).reshape(1, C)
    if Cp != C:
        w = jnp.pad(w, ((0, 0), (0, Cp - C)))
        b = jnp.pad(b, ((0, 0), (0, Cp - C)))
    return w, b


def init_params(key, input_dim=INPUT_DIM, num_classes=NUM_CLASSES, dtype=jnp.float32):
    """Mimics nn.Linear's U(-1/sqrt(D), 1/sqrt(D)) init; returns padded params.

    Note: weight is stored as (D, C) — the transpose of PyTorch's (C, D) —
    so the kernel computes x @ W directly.
    """
    kw, kb = jax.random.split(key)
    bound = 1.0 / float(input_dim) ** 0.5
    w = jax.random.uniform(kw, (input_dim, num_classes), dtype, -bound, bound)
    b = jax.random.uniform(kb, (num_classes,), dtype, -bound, bound)
    return prepare_params(w, b)


# --------------------------------------------------------------------------- #
# Demo / correctness check
# --------------------------------------------------------------------------- #
if __name__ == "__main__":
    key = jax.random.PRNGKey(0)
    kx1, kx2, kp = jax.random.split(key, 3)

    w_p, b_p = init_params(kp)           # padded once, reused across calls

    # Case 1: tiny sublane-aligned batch, strict (B, 65) interface.
    x1 = jax.random.normal(kx1, (8, INPUT_DIM), jnp.float32)
    out1 = classifier_forward(x1, w_p, b_p)
    jax.block_until_ready(out1)
    ref1 = (x1 @ w_p + b_p)[:, :NUM_CLASSES]
    assert out1.shape == (8, NUM_CLASSES)
    assert jnp.allclose(out1, ref1, atol=1e-5, rtol=1e-5)

    # Case 2: unaligned batch -> 2 grid steps, partial last block (no x padding),
    # padded zero-copy output path with -inf pad columns.
    x2 = jax.random.normal(kx2, (10, INPUT_DIM), jnp.float32)
    out2 = classifier_forward_padded(x2, w_p, b_p)
    jax.block_until_ready(out2)
    ref2 = (x2 @ w_p + b_p)[:, :NUM_CLASSES]
    assert out2.shape == (10, LANE)
    assert jnp.allclose(out2[:, :NUM_CLASSES], ref2, atol=1e-5, rtol=1e-5)
    assert bool(jnp.all(jnp.isneginf(out2[:, NUM_CLASSES:])))

    print("KERNEL_OK")
</pallas_src>

<mosaic_0001>
module attributes {stable_mosaic.version = 11 : i64} {
  func.func @_linear_kernel(%arg0: i32, %arg1: memref<8x256xf32, #tpu.memory_space<vmem>>, %arg2: memref<256x128xf32, #tpu.memory_space<vmem>>, %arg3: memref<1x128xf32, #tpu.memory_space<vmem>>, %arg4: memref<8x128xf32, #tpu.memory_space<vmem>>) attributes {dimension_semantics = [#tpu.dimension_semantics<parallel>], iteration_bounds = array<i64: 1>, scalar_prefetch = 0 : i64, scratch_operands = 0 : i64, tpu.core_type = #tpu.core_type<tc>, window_params = [{transform_indices = @transform_0, window_bounds = array<i64: 8, 256>}, {pipeline_mode = #tpu.pipeline_mode<synchronous>, transform_indices = @transform_1, window_bounds = array<i64: 256, 128>}, {pipeline_mode = #tpu.pipeline_mode<synchronous>, transform_indices = @transform_2, window_bounds = array<i64: 1, 128>}, {transform_indices = @transform_3, window_bounds = array<i64: 8, 128>}]} {
    %c0 = arith.constant 0 : index
    %c0_0 = arith.constant 0 : index
    %0 = vector.load %arg1[%c0, %c0_0] : memref<8x256xf32, #tpu.memory_space<vmem>>, vector<8x256xf32>
    %c0_1 = arith.constant 0 : index
    %c0_2 = arith.constant 0 : index
    %1 = vector.load %arg2[%c0_1, %c0_2] : memref<256x128xf32, #tpu.memory_space<vmem>>, vector<256x128xf32>
    %cst = arith.constant dense<0.000000e+00> : vector<8x128xf32>
    %2 = tpu.matmul %0, %1, %cst {dimension_numbers = #tpu.dot_dimension_numbers<[1], [0], [0], [1], [0, 0, 1, 1], [], []>} : vector<8x256xf32>, vector<256x128xf32>, vector<8x128xf32> -> vector<8x128xf32>
    %c0_3 = arith.constant 0 : index
    %c0_4 = arith.constant 0 : index
    %3 = vector.load %arg3[%c0_3, %c0_4] : memref<1x128xf32, #tpu.memory_space<vmem>>, vector<1x128xf32>
    %4 = vector.broadcast %3 : vector<1x128xf32> to vector<8x128xf32>
    %5 = arith.addf %2, %4 : vector<8x128xf32>
    %6 = tpu.iota {dimensions = array<i32: 1>} : vector<8x128xi32>
    %c65_i32 = arith.constant 65 : i32
    %7 = vector.broadcast %c65_i32 : i32 to vector<8x128xi32>
    %8 = arith.cmpi slt, %6, %7 : vector<8x128xi32>
    %cst_5 = arith.constant 0xFF800000 : f32
    %9 = vector.broadcast %cst_5 : f32 to vector<8x128xf32>
    %10 = arith.select %8, %5, %9 : vector<8x128xi1>, vector<8x128xf32>
    %c0_6 = arith.constant 0 : index
    %c0_7 = arith.constant 0 : index
    %11 = vector.load %arg4[%c0_6, %c0_7] : memref<8x128xf32, #tpu.memory_space<vmem>>, vector<8x128xf32>
    tpu.vector_store %arg4[%c0_6, %c0_7], %10 {strides = array<i32>} : memref<8x128xf32, #tpu.memory_space<vmem>>, vector<8x128xf32>,
    return
  }
  func.func @transform_0(%arg0: i32) -> (i32, i32) {
    %c0_i32 = arith.constant 0 : i32
    %c0_i32_0 = arith.constant 0 : i32
    return %arg0, %c0_i32 : i32, i32
  }
  func.func @transform_1(%arg0: i32) -> (i32, i32) {
    %c0_i32 = arith.constant 0 : i32
    %c0_i32_0 = arith.constant 0 : i32
    %c0_i32_1 = arith.constant 0 : i32
    return %c0_i32, %c0_i32_0 : i32, i32
  }
  func.func @transform_2(%arg0: i32) -> (i32, i32) {
    %c0_i32 = arith.constant 0 : i32
    %c0_i32_0 = arith.constant 0 : i32
    %c0_i32_1 = arith.constant 0 : i32
    return %c0_i32, %c0_i32_0 : i32, i32
  }
  func.func @transform_3(%arg0: i32) -> (i32, i32) {
    %c0_i32 = arith.constant 0 : i32
    %c0_i32_0 = arith.constant 0 : i32
    return %arg0, %c0_i32 : i32, i32
  }
}

</mosaic_0001>

<llo_original>
// kernel: tpu_custom_call.1
$region0: #{tpu_custom_call.1}
  #allocation0 [shape = 'u32[]', space=smem, size = 0x4, offset = 0x4, fixed_abs, tag = 'smem constant byte address 0x4 - core index']
  #allocation1 [shape = 'u32[72,128]{1,0:T(1,128)}', space=vmem, size = 0x9000, scoped, tag = 'internal scratch']
  %s0 = inlined_call_operand.hbm [shape: f32[8,256], index: 0, kind: input, shape index: {}]
  %s1 = inlined_call_operand.hbm [shape: f32[256,128], index: 1, kind: input, shape index: {}]
  %s2 = inlined_call_operand.vmem [shape: f32[1,128], index: 2, kind: input, shape index: {}]
  %s3 = inlined_call_operand.hbm [shape: f32[8,128], index: 3, kind: output, shape index: {}]
  %s4 = sld [smem:[#allocation0]]
  $region30: #{tpu_custom_call.1} parent=0
    _
  %s6 = ssub.s32 1, %s4
  %s7 = scalar_select 0, %s6, %s4
  $region1: #{tpu_custom_call.1} parent=0
    #allocation2 [shape = 'u8[8192]{0}', space=vmem, size = 0x2000, scoped, tag = 'input window, operand 0, single buffered']
    #allocation3 [shape = 's32[1]{0}', space=sflag, size = 0x4, scoped, tag = 'scoped memory for tpu_custom_call.1']
    #allocation4 [shape = 's32[1]{0}', space=sflag, size = 0x4, scoped, tag = 'scoped memory for tpu_custom_call.1']
    #allocation5 [shape = 'u8[131072]{0}', space=vmem, size = 0x20000, scoped, tag = 'input window, operand 1, single buffered']
    #allocation6 [shape = 's32[1]{0}', space=sflag, size = 0x4, scoped, tag = 'scoped memory for tpu_custom_call.1']
    #allocation7 [shape = 'u8[4096]{0}', space=vmem, size = 0x1000, scoped, tag = 'output window, operand 0, single buffered']
    %8 = vsyncpa [#allocation3], 0
    %9 = vsyncpa [#allocation6], 0
    %10 = vsyncpa [#allocation4], 0
    // Predicated region
    $region2: #{tpu_custom_call.1} parent=1 // pred_check
      _
    $region3: #{tpu_custom_call.1} parent=1 // pred_check_branch
      %12 = sbr.rel (0) target = $region5
    $region4: #{tpu_custom_call.1} parent=1 // pred_region
      %14 = vsyncadd [#allocation3], 0
      %s16 = sshll.u32 %s0, 4
      %s17 = int_to_ptr.hbm [resolvable:$true] %s16
      %s18 = sshll.u32 [#allocation2], 4
      %s19 = int_to_ptr.vmem [resolvable:$true] %s18
      %21 = dma.hbm_to_vmem [thread:$0]  %s17, 256, %s19, [#allocation3]
    $region5: #{tpu_custom_call.1} parent=1 // pred_fallthru
      _
    // Predicated region
    $region6: #{tpu_custom_call.1} parent=1 // pred_check
      _
    $region7: #{tpu_custom_call.1} parent=1 // pred_check_branch
      %23 = sbr.rel (0) target = $region9
    $region8: #{tpu_custom_call.1} parent=1 // pred_region
      %25 = vsyncadd [#allocation6], 0
      %s26 = sshll.u32 %s1, 4
      %s27 = int_to_ptr.hbm [resolvable:$true] %s26
      %s28 = sshll.u32 [#allocation5], 4
      %s29 = int_to_ptr.vmem [resolvable:$true] %s28
      %34 = dma.hbm_to_vmem [thread:$0]  %s27, 4096, %s29, [#allocation6], 128, 128, 8
    $region9: #{tpu_custom_call.1} parent=1 // pred_fallthru
      _
    // Predicated region
    $region10: #{tpu_custom_call.1} parent=1 // pred_check
      _
    $region11: #{tpu_custom_call.1} parent=1 // pred_check_branch
      %36 = sbr.rel (0) target = $region13
    $region12: #{tpu_custom_call.1} parent=1 // pred_region
      _
    $region13: #{tpu_custom_call.1} parent=1 // pred_fallthru
      _
    // Predicated region
    $region14: #{tpu_custom_call.1} parent=1 // pred_check
      _
    $region15: #{tpu_custom_call.1} parent=1 // pred_check_branch
      %38 = sbr.rel (0) target = $region17
    $region16: #{tpu_custom_call.1} parent=1 // pred_region
      %40 = dma.done [#allocation3], 256
    $region17: #{tpu_custom_call.1} parent=1 // pred_fallthru
      _
    // Predicated region
    $region18: #{tpu_custom_call.1} parent=1 // pred_check
      _
    $region19: #{tpu_custom_call.1} parent=1 // pred_check_branch
      %42 = sbr.rel (0) target = $region21
    $region20: #{tpu_custom_call.1} parent=1 // pred_region
      %44 = dma.done [#allocation6], 4096
    $region21: #{tpu_custom_call.1} parent=1 // pred_fallthru
      _
    %v45 = vld [vmem:[#allocation2] sm:$0xff]
    %v46 = vld [vmem:[#allocation2 + $0x8] sm:$0xff]
    %v47 = vld [vmem:[#allocation5] sm:$0xff]
    %v48 = vld [vmem:[#allocation5 + $0x8] sm:$0xff]
    %v49 = vld [vmem:[#allocation5 + $0x10] sm:$0xff]
    %v50 = vld [vmem:[#allocation5 + $0x18] sm:$0xff]
    %v51 = vld [vmem:[#allocation5 + $0x20] sm:$0xff]
    %v52 = vld [vmem:[#allocation5 + $0x28] sm:$0xff]
    %v53 = vld [vmem:[#allocation5 + $0x30] sm:$0xff]
    %v54 = vld [vmem:[#allocation5 + $0x38] sm:$0xff]
    %v55 = vld [vmem:[#allocation5 + $0x40] sm:$0xff]
    %v56 = vld [vmem:[#allocation5 + $0x48] sm:$0xff]
    %v57 = vld [vmem:[#allocation5 + $0x50] sm:$0xff]
    %v58 = vld [vmem:[#allocation5 + $0x58] sm:$0xff]
    %v59 = vld [vmem:[#allocation5 + $0x60] sm:$0xff]
    %v60 = vld [vmem:[#allocation5 + $0x68] sm:$0xff]
    %v61 = vld [vmem:[#allocation5 + $0x70] sm:$0xff]
    %v62 = vld [vmem:[#allocation5 + $0x78] sm:$0xff]
    %v63 = vld [vmem:[#allocation5 + $0x80] sm:$0xff]
    %v64 = vld [vmem:[#allocation5 + $0x88] sm:$0xff]
    %v65 = vld [vmem:[#allocation5 + $0x90] sm:$0xff]
    %v66 = vld [vmem:[#allocation5 + $0x98] sm:$0xff]
    %v67 = vld [vmem:[#allocation5 + $0xa0] sm:$0xff]
    %v68 = vld [vmem:[#allocation5 + $0xa8] sm:$0xff]
    %v69 = vld [vmem:[#allocation5 + $0xb0] sm:$0xff]
    %v70 = vld [vmem:[#allocation5 + $0xb8] sm:$0xff]
    %v71 = vld [vmem:[#allocation5 + $0xc0] sm:$0xff]
    %v72 = vld [vmem:[#allocation5 + $0xc8] sm:$0xff]
    %v73 = vld [vmem:[#allocation5 + $0xd0] sm:$0xff]
    %v74 = vld [vmem:[#allocation5 + $0xd8] sm:$0xff]
    %v75 = vld [vmem:[#allocation5 + $0xe0] sm:$0xff]
    %v76 = vld [vmem:[#allocation5 + $0xe8] sm:$0xff]
    %v77 = vld [vmem:[#allocation5 + $0xf0] sm:$0xff]
    %v78 = vld [vmem:[#allocation5 + $0xf8] sm:$0xff]
    %v79 = vld [vmem:[%s2] sm:$0x1]
    %v81 = vperm.slane %v79, 0
    %83 = vmatpush.msra.mxu0 %v62
    %84 = vmatpush.msra.mxu0 %v61
    %85 = vmatpush.msra.mxu0 %v60
    %86 = vmatpush.msra.mxu0 %v59
    %87 = vmatpush.msra.mxu0 %v58
    %88 = vmatpush.msra.mxu0 %v57
    %89 = vmatpush.msra.mxu0 %v56
    %90 = vmatpush.msra.mxu0 %v55
    %91 = vmatpush.msra.mxu0 %v54
    %92 = vmatpush.msra.mxu0 %v53
    %93 = vmatpush.msra.mxu0 %v52
    %94 = vmatpush.msra.mxu0 %v51
    %95 = vmatpush.msra.mxu0 %v50
    %96 = vmatpush.msra.mxu0 %v49
    %97 = vmatpush.msra.mxu0 %v48
    %98 = vmatpush.msra.mxu0 %v47
    %99 = vmatmul.f32.gmra.mxu0 %v45
    %v100 = vpop.f32.mrf.mxu0
    %v101 = vadd.f32 %v81, %v100
    %102 = vdwg.mxu0
    %103 = vmatpush.msra.mxu0 %v78
    %104 = vmatpush.msra.mxu0 %v77
    %105 = vmatpush.msra.mxu0 %v76
    %106 = vmatpush.msra.mxu0 %v75
    %107 = vmatpush.msra.mxu0 %v74
    %108 = vmatpush.msra.mxu0 %v73
    %109 = vmatpush.msra.mxu0 %v72
    %110 = vmatpush.msra.mxu0 %v71
    %111 = vmatpush.msra.mxu0 %v70
    %112 = vmatpush.msra.mxu0 %v69
    %113 = vmatpush.msra.mxu0 %v68
    %114 = vmatpush.msra.mxu0 %v67
    %115 = vmatpush.msra.mxu0 %v66
    %116 = vmatpush.msra.mxu0 %v65
    %117 = vmatpush.msra.mxu0 %v64
    %118 = vmatpush.msra.mxu0 %v63
    %119 = vmatmul.f32.gmra.mxu0 %v46
    %v120 = vpop.f32.mrf.mxu0
    %v121 = vadd.f32 %v101, %v120
    %122 = vdwg.mxu0
    %v123 = vlaneseq
    %v124 = vand.u32 %v123, 127
    %vm125 = vcmp.lt.s32.totalorder %v124, 65
    %v126 = vsel %vm125, %v121, -inf
    %127 = vst [vmem:[#allocation7] sm:$0xff] %v126
    // Predicated region
    $region22: #{tpu_custom_call.1} parent=1 // pred_check
      _
    $region23: #{tpu_custom_call.1} parent=1 // pred_check_branch
      %129 = sbr.rel (0) target = $region25
    $region24: #{tpu_custom_call.1} parent=1 // pred_region
      %131 = vsyncadd [#allocation4], 0
      %s133 = sshll.u32 [#allocation7], 4
      %s134 = int_to_ptr.vmem [resolvable:$true] %s133
      %s135 = sshll.u32 %s3, 4
      %s136 = int_to_ptr.hbm [resolvable:$true] %s135
      %138 = dma.vmem_to_hbm [thread:$0]  %s134, 128, %s136, [#allocation4]
    $region25: #{tpu_custom_call.1} parent=1 // pred_fallthru
      _
    // Predicated region
    $region26: #{tpu_custom_call.1} parent=1 // pred_check
      _
    $region27: #{tpu_custom_call.1} parent=1 // pred_check_branch
      %140 = sbr.rel (0) target = $region29
    $region28: #{tpu_custom_call.1} parent=1 // pred_region
      %142 = dma.done [#allocation4], 128
    $region29: #{tpu_custom_call.1} parent=1 // pred_fallthru
      _
    %143 = vsyncpa [#allocation3], 1
    %144 = vsyncpa [#allocation6], 1
    %145 = vsyncpa [#allocation4], 1

</llo_original>
